<compile_context>
chip_gen: v5e
topology: v5e:2x2
jax: 0.10.0
libtpu: 0.0.40
codegen_flags: <defaults>
</compile_context>

<pallas_src>
import jax
import jax.numpy as jnp
from jax.experimental import pallas as pl
from jax.experimental.pallas import tpu as pltpu


def _dijet_resnet_block_kernel(x_ref, d_ref, wx1_ref, wd1_ref, b1_ref,
                               wx2_ref, wd2_ref, b2_ref, o_ref):
    # x_ref: (TB, nd*nx*6)    d_ref: (TB, nd*6)
    # wx*:   (nd*nx*6, nd*6)  wd*:   (nd*6, nd*6)   b*: (1, nd*6)
    x = x_ref[...]
    d0 = d_ref[...]

    # reinforce1 + residual
    d1 = (jnp.dot(x, wx1_ref[...], preferred_element_type=jnp.float32)
          + jnp.dot(d0, wd1_ref[...], preferred_element_type=jnp.float32)
          + b1_ref[...] + d0)
    # SiLU (exact logistic; exp runs on the EUP slot, essentially free here)
    a = d1 * (1.0 / (1.0 + jnp.exp(-d1)))
    # reinforce2 + residual
    d2 = (jnp.dot(x, wx2_ref[...], preferred_element_type=jnp.float32)
          + jnp.dot(a, wd2_ref[...], preferred_element_type=jnp.float32)
          + b2_ref[...] + d0)
    o_ref[...] = d2.astype(o_ref.dtype)


def _fuse_conv_weights(weight, nx):
    """Fold concat + strided Conv1d into two dense matmul operands.

    weight: (nd, nd, nx+1)  Conv1d weight (out_ch, in_ch, kernel tap).
    Returns (Wx, Wd) with
      Wx[c*(nx*6)+w, o*6+t] = weight[o, c, k]   where w == nx*t + k, k < nx
      Wd[c*6+t,      o*6+u] = weight[o, c, nx]  where t == u
    so out_flat = x_flat @ Wx + d_flat @ Wd reproduces the conv over the
    interleaved (x, x, d) stride-(nx+1) windows.
    """
    nd = weight.shape[0]
    nw = 6 * nx
    dt = weight.dtype
    w_idx = jnp.arange(nw)[:, None, None]          # (nw, 1, 1)
    t_idx = jnp.arange(6)[None, :, None]           # (1, 6, 1)
    k_idx = jnp.arange(nx)[None, None, :]          # (1, 1, nx)
    sel = (w_idx == nx * t_idx + k_idx).astype(dt)                 # (nw, 6, nx)
    wx = jnp.einsum('ock,wtk->cwot', weight[:, :, :nx], sel)       # (nd, nw, nd, 6)
    wx = wx.reshape(nd * nw, nd * 6)
    wd = jnp.einsum('oc,tu->ctou', weight[:, :, nx], jnp.eye(6, dtype=dt))
    wd = wd.reshape(nd * 6, nd * 6)
    return wx, wd


def _pick_batch_tile(n, nd, nx):
    # Double-buffered x/d/out f32 tiles; keep well under the smallest
    # per-generation scoped VMEM budget (v7x: 64 MiB physical, 32 MiB scoped).
    per_row_bytes = (6 * nx + 6 + 6) * nd * 4
    budget_bytes = 8 << 20
    tb = budget_bytes // (2 * per_row_bytes)
    tb = max(8, min(2048, (tb // 8) * 8))
    return n if n <= tb else tb


def dijet_resnet_block(x, d, w1, b1, w2, b2, *, tile_batch=None):
    """Pallas forward of dijetResNetBlock (useOthJets inferred from w1's kernel size).

    x : (n, nd, nx*6) f32, d : (n, nd, 6) f32
    w1, w2 : (nd, nd, nx+1) f32 (Conv1d weights), b1, b2 : (nd,) f32
    returns (n, nd, 6) f32
    """
    n, nd, six = d.shape
    assert six == 6
    nx = w1.shape[2] - 1
    assert x.shape == (n, nd, nx * 6)

    # Free row-major reshapes (views): no transposes, no extra HBM traffic.
    x_flat = x.reshape(n, nd * nx * 6)
    d_flat = d.reshape(n, nd * 6)

    wx1, wd1 = _fuse_conv_weights(w1, nx)
    wx2, wd2 = _fuse_conv_weights(w2, nx)
    b1f = jnp.repeat(b1, 6).reshape(1, nd * 6)     # [o*6 + t] = b1[o]
    b2f = jnp.repeat(b2, 6).reshape(1, nd * 6)

    tb = tile_batch if tile_batch is not None else _pick_batch_tile(n, nd, nx)
    grid = (pl.cdiv(n, tb),)
    fx = nd * nx * 6
    fo = nd * 6
    const2d = lambda i: (0, 0)

    out_flat = pl.pallas_call(
        _dijet_resnet_block_kernel,
        out_shape=jax.ShapeDtypeStruct((n, fo), jnp.float32),
        grid=grid,
        in_specs=[
            pl.BlockSpec((tb, fx), lambda i: (i, 0)),   # x tile (streams over batch)
            pl.BlockSpec((tb, fo), lambda i: (i, 0)),   # d tile
            pl.BlockSpec((fx, fo), const2d),            # fused weights / biases stay
            pl.BlockSpec((fo, fo), const2d),            # VMEM-resident across the grid
            pl.BlockSpec((1, fo), const2d),
            pl.BlockSpec((fx, fo), const2d),
            pl.BlockSpec((fo, fo), const2d),
            pl.BlockSpec((1, fo), const2d),
        ],
        out_specs=pl.BlockSpec((tb, fo), lambda i: (i, 0)),
        compiler_params=pltpu.CompilerParams(
            dimension_semantics=("parallel",),
            vmem_limit_bytes=32 * 1024 * 1024,
        ),
    )(x_flat, d_flat, wx1, wd1, b1f, wx2, wd2, b2f)

    return out_flat.reshape(n, nd, 6)


def _reference(x, d, w1, b1, w2, b2):
    # Pure-JAX replica of the PyTorch forward (dijetReinforceLayer x2 + residual + SiLU).
    n, nd, _ = d.shape
    nx = w1.shape[2] - 1

    def reinforce(xx, dd, w, b):
        parts = []
        for t in range(6):
            parts.append(xx[:, :, nx * t:nx * (t + 1)])
            parts.append(dd[:, :, t:t + 1])
        q = jnp.concatenate(parts, axis=2)                      # (n, nd, (nx+1)*6)
        out = jax.lax.conv_general_dilated(
            q, w, window_strides=(nx + 1,), padding="VALID",
            dimension_numbers=("NCH", "OIH", "NCH"),
            precision=jax.lax.Precision.HIGHEST)
        return out + b.reshape(1, nd, 1)

    d0 = d
    h = reinforce(x, d, w1, b1) + d0
    h = h * jax.nn.sigmoid(h)                                   # SiLU
    return reinforce(x, h, w2, b2) + d0


if __name__ == "__main__":
    key = jax.random.PRNGKey(0)
    n, nd = 2, 8          # batch, dijetFeatures
    nx = 2                # useOthJets=False -> kernel size 3, x has nx*6 = 12 columns

    kx, kd, kw1, kb1, kw2, kb2 = jax.random.split(key, 6)
    x = jax.random.normal(kx, (n, nd, nx * 6), dtype=jnp.float32)
    d = jax.random.normal(kd, (n, nd, 6), dtype=jnp.float32)

    # PyTorch Conv1d default init: U(-1/sqrt(fan_in), 1/sqrt(fan_in)), fan_in = nd * ks
    bound = float(nd * (nx + 1)) ** -0.5
    w1 = jax.random.uniform(kw1, (nd, nd, nx + 1), jnp.float32, -bound, bound)
    b1 = jax.random.uniform(kb1, (nd,), jnp.float32, -bound, bound)
    w2 = jax.random.uniform(kw2, (nd, nd, nx + 1), jnp.float32, -bound, bound)
    b2 = jax.random.uniform(kb2, (nd,), jnp.float32, -bound, bound)

    out = dijet_resnet_block(x, d, w1, b1, w2, b2)
    jax.block_until_ready(out)
    ref = _reference(x, d, w1, b1, w2, b2)
    assert out.shape == (n, nd, 6), out.shape
    assert jnp.allclose(out, ref, atol=1e-5, rtol=1e-5), float(jnp.max(jnp.abs(out - ref)))

    # Exercise the batch-tiled / ragged-last-tile path at a still-small size.
    n2 = 20
    kx2, kd2 = jax.random.split(jax.random.PRNGKey(1))
    x2 = jax.random.normal(kx2, (n2, nd, nx * 6), dtype=jnp.float32)
    d2 = jax.random.normal(kd2, (n2, nd, 6), dtype=jnp.float32)
    out2 = dijet_resnet_block(x2, d2, w1, b1, w2, b2, tile_batch=8)
    jax.block_until_ready(out2)
    ref2 = _reference(x2, d2, w1, b1, w2, b2)
    assert jnp.allclose(out2, ref2, atol=1e-5, rtol=1e-5), float(jnp.max(jnp.abs(out2 - ref2)))

    print("KERNEL_OK")
</pallas_src>

<mosaic_0001>
module attributes {stable_mosaic.version = 11 : i64} {
  func.func @_dijet_resnet_block_kernel(%arg0: i32, %arg1: memref<2x96xf32, #tpu.memory_space<vmem>>, %arg2: memref<2x48xf32, #tpu.memory_space<vmem>>, %arg3: memref<96x48xf32, #tpu.memory_space<vmem>>, %arg4: memref<48x48xf32, #tpu.memory_space<vmem>>, %arg5: memref<1x48xf32, #tpu.memory_space<vmem>>, %arg6: memref<96x48xf32, #tpu.memory_space<vmem>>, %arg7: memref<48x48xf32, #tpu.memory_space<vmem>>, %arg8: memref<1x48xf32, #tpu.memory_space<vmem>>, %arg9: memref<2x48xf32, #tpu.memory_space<vmem>>) attributes {dimension_semantics = [#tpu.dimension_semantics<parallel>], iteration_bounds = array<i64: 1>, scalar_prefetch = 0 : i64, scratch_operands = 0 : i64, tpu.core_type = #tpu.core_type<tc>, window_params = [{transform_indices = @transform_0, window_bounds = array<i64: 2, 96>}, {transform_indices = @transform_1, window_bounds = array<i64: 2, 48>}, {pipeline_mode = #tpu.pipeline_mode<synchronous>, transform_indices = @transform_2, window_bounds = array<i64: 96, 48>}, {pipeline_mode = #tpu.pipeline_mode<synchronous>, transform_indices = @transform_3, window_bounds = array<i64: 48, 48>}, {pipeline_mode = #tpu.pipeline_mode<synchronous>, transform_indices = @transform_4, window_bounds = array<i64: 1, 48>}, {pipeline_mode = #tpu.pipeline_mode<synchronous>, transform_indices = @transform_5, window_bounds = array<i64: 96, 48>}, {pipeline_mode = #tpu.pipeline_mode<synchronous>, transform_indices = @transform_6, window_bounds = array<i64: 48, 48>}, {pipeline_mode = #tpu.pipeline_mode<synchronous>, transform_indices = @transform_7, window_bounds = array<i64: 1, 48>}, {transform_indices = @transform_8, window_bounds = array<i64: 2, 48>}]} {
    %c0 = arith.constant 0 : index
    %c0_0 = arith.constant 0 : index
    %0 = vector.load %arg1[%c0, %c0_0] : memref<2x96xf32, #tpu.memory_space<vmem>>, vector<2x96xf32>
    %c0_1 = arith.constant 0 : index
    %c0_2 = arith.constant 0 : index
    %1 = vector.load %arg2[%c0_1, %c0_2] : memref<2x48xf32, #tpu.memory_space<vmem>>, vector<2x48xf32>
    %c0_3 = arith.constant 0 : index
    %c0_4 = arith.constant 0 : index
    %2 = vector.load %arg3[%c0_3, %c0_4] : memref<96x48xf32, #tpu.memory_space<vmem>>, vector<96x48xf32>
    %cst = arith.constant dense<0.000000e+00> : vector<2x48xf32>
    %3 = tpu.matmul %0, %2, %cst {dimension_numbers = #tpu.dot_dimension_numbers<[1], [0], [0], [1], [0, 0, 1, 1], [], []>} : vector<2x96xf32>, vector<96x48xf32>, vector<2x48xf32> -> vector<2x48xf32>
    %c0_5 = arith.constant 0 : index
    %c0_6 = arith.constant 0 : index
    %4 = vector.load %arg4[%c0_5, %c0_6] : memref<48x48xf32, #tpu.memory_space<vmem>>, vector<48x48xf32>
    %cst_7 = arith.constant dense<0.000000e+00> : vector<2x48xf32>
    %5 = tpu.matmul %1, %4, %cst_7 {dimension_numbers = #tpu.dot_dimension_numbers<[1], [0], [0], [1], [0, 0, 1, 1], [], []>} : vector<2x48xf32>, vector<48x48xf32>, vector<2x48xf32> -> vector<2x48xf32>
    %6 = arith.addf %3, %5 : vector<2x48xf32>
    %c0_8 = arith.constant 0 : index
    %c0_9 = arith.constant 0 : index
    %7 = vector.load %arg5[%c0_8, %c0_9] : memref<1x48xf32, #tpu.memory_space<vmem>>, vector<1x48xf32>
    %8 = vector.broadcast %7 : vector<1x48xf32> to vector<2x48xf32>
    %9 = arith.addf %6, %8 : vector<2x48xf32>
    %10 = arith.addf %9, %1 : vector<2x48xf32>
    %cst_10 = arith.constant 0.000000e+00 : f32
    %11 = vector.broadcast %cst_10 : f32 to vector<2x48xf32>
    %12 = arith.subf %11, %10 : vector<2x48xf32>
    %13 = math.exp %12 : vector<2x48xf32>
    %cst_11 = arith.constant 1.000000e+00 : f32
    %14 = vector.broadcast %cst_11 : f32 to vector<2x48xf32>
    %15 = arith.addf %14, %13 : vector<2x48xf32>
    %cst_12 = arith.constant 1.000000e+00 : f32
    %16 = vector.broadcast %cst_12 : f32 to vector<2x48xf32>
    %17 = arith.divf %16, %15 : vector<2x48xf32>
    %18 = arith.mulf %10, %17 : vector<2x48xf32>
    %c0_13 = arith.constant 0 : index
    %c0_14 = arith.constant 0 : index
    %19 = vector.load %arg6[%c0_13, %c0_14] : memref<96x48xf32, #tpu.memory_space<vmem>>, vector<96x48xf32>
    %cst_15 = arith.constant dense<0.000000e+00> : vector<2x48xf32>
    %20 = tpu.matmul %0, %19, %cst_15 {dimension_numbers = #tpu.dot_dimension_numbers<[1], [0], [0], [1], [0, 0, 1, 1], [], []>} : vector<2x96xf32>, vector<96x48xf32>, vector<2x48xf32> -> vector<2x48xf32>
    %c0_16 = arith.constant 0 : index
    %c0_17 = arith.constant 0 : index
    %21 = vector.load %arg7[%c0_16, %c0_17] : memref<48x48xf32, #tpu.memory_space<vmem>>, vector<48x48xf32>
    %cst_18 = arith.constant dense<0.000000e+00> : vector<2x48xf32>
    %22 = tpu.matmul %18, %21, %cst_18 {dimension_numbers = #tpu.dot_dimension_numbers<[1], [0], [0], [1], [0, 0, 1, 1], [], []>} : vector<2x48xf32>, vector<48x48xf32>, vector<2x48xf32> -> vector<2x48xf32>
    %23 = arith.addf %20, %22 : vector<2x48xf32>
    %c0_19 = arith.constant 0 : index
    %c0_20 = arith.constant 0 : index
    %24 = vector.load %arg8[%c0_19, %c0_20] : memref<1x48xf32, #tpu.memory_space<vmem>>, vector<1x48xf32>
    %25 = vector.broadcast %24 : vector<1x48xf32> to vector<2x48xf32>
    %26 = arith.addf %23, %25 : vector<2x48xf32>
    %27 = arith.addf %26, %1 : vector<2x48xf32>
    %c0_21 = arith.constant 0 : index
    %c0_22 = arith.constant 0 : index
    %28 = vector.load %arg9[%c0_21, %c0_22] : memref<2x48xf32, #tpu.memory_space<vmem>>, vector<2x48xf32>
    tpu.vector_store %arg9[%c0_21, %c0_22], %27 {strides = array<i32>} : memref<2x48xf32, #tpu.memory_space<vmem>>, vector<2x48xf32>,
    return
  }
  func.func @transform_0(%arg0: i32) -> (i32, i32) {
    %c0_i32 = arith.constant 0 : i32
    %c0_i32_0 = arith.constant 0 : i32
    return %arg0, %c0_i32 : i32, i32
  }
  func.func @transform_1(%arg0: i32) -> (i32, i32) {
    %c0_i32 = arith.constant 0 : i32
    %c0_i32_0 = arith.constant 0 : i32
    return %arg0, %c0_i32 : i32, i32
  }
  func.func @transform_2(%arg0: i32) -> (i32, i32) {
    %c0_i32 = arith.constant 0 : i32
    %c0_i32_0 = arith.constant 0 : i32
    %c0_i32_1 = arith.constant 0 : i32
    return %c0_i32, %c0_i32_0 : i32, i32
  }
  func.func @transform_3(%arg0: i32) -> (i32, i32) {
    %c0_i32 = arith.constant 0 : i32
    %c0_i32_0 = arith.constant 0 : i32
    %c0_i32_1 = arith.constant 0 : i32
    return %c0_i32, %c0_i32_0 : i32, i32
  }
  func.func @transform_4(%arg0: i32) -> (i32, i32) {
    %c0_i32 = arith.constant 0 : i32
    %c0_i32_0 = arith.constant 0 : i32
    %c0_i32_1 = arith.constant 0 : i32
    return %c0_i32, %c0_i32_0 : i32, i32
  }
  func.func @transform_5(%arg0: i32) -> (i32, i32) {
    %c0_i32 = arith.constant 0 : i32
    %c0_i32_0 = arith.constant 0 : i32
    %c0_i32_1 = arith.constant 0 : i32
    return %c0_i32, %c0_i32_0 : i32, i32
  }
  func.func @transform_6(%arg0: i32) -> (i32, i32) {
    %c0_i32 = arith.constant 0 : i32
    %c0_i32_0 = arith.constant 0 : i32
    %c0_i32_1 = arith.constant 0 : i32
    return %c0_i32, %c0_i32_0 : i32, i32
  }
  func.func @transform_7(%arg0: i32) -> (i32, i32) {
    %c0_i32 = arith.constant 0 : i32
    %c0_i32_0 = arith.constant 0 : i32
    %c0_i32_1 = arith.constant 0 : i32
    return %c0_i32, %c0_i32_0 : i32, i32
  }
  func.func @transform_8(%arg0: i32) -> (i32, i32) {
    %c0_i32 = arith.constant 0 : i32
    %c0_i32_0 = arith.constant 0 : i32
    return %arg0, %c0_i32 : i32, i32
  }
}

</mosaic_0001>

<llo_original>
// kernel: tpu_custom_call.1
$region0: #{tpu_custom_call.1}
  #allocation0 [shape = 'u32[]', space=smem, size = 0x4, offset = 0x4, fixed_abs, tag = 'smem constant byte address 0x4 - core index']
  #allocation1 [shape = 'u32[72,128]{1,0:T(1,128)}', space=vmem, size = 0x9000, scoped, tag = 'internal scratch']
  %s0 = inlined_call_operand.vmem [shape: f32[2,96], index: 0, kind: input, shape index: {}]
  %s1 = inlined_call_operand.vmem [shape: f32[2,48], index: 1, kind: input, shape index: {}]
  %s2 = inlined_call_operand.vmem [shape: f32[96,48], index: 2, kind: input, shape index: {}]
  %s3 = inlined_call_operand.vmem [shape: f32[48,48], index: 3, kind: input, shape index: {}]
  %s4 = inlined_call_operand.vmem [shape: f32[1,48], index: 4, kind: input, shape index: {}]
  %s5 = inlined_call_operand.vmem [shape: f32[96,48], index: 5, kind: input, shape index: {}]
  %s6 = inlined_call_operand.vmem [shape: f32[48,48], index: 6, kind: input, shape index: {}]
  %s7 = inlined_call_operand.vmem [shape: f32[1,48], index: 7, kind: input, shape index: {}]
  %s8 = inlined_call_operand.hbm [shape: f32[2,48], index: 8, kind: output, shape index: {}]
  %s9 = sld [smem:[#allocation0]]
  $region42: #{tpu_custom_call.1} parent=0
    _
  %s11 = ssub.s32 1, %s9
  %s12 = scalar_select 0, %s11, %s9
  $region1: #{tpu_custom_call.1} parent=0
    #allocation2 [shape = 'u8[1024]{0}', space=vmem, size = 0x400, scoped, tag = 'output window, operand 0, single buffered']
    #allocation3 [shape = 's32[1]{0}', space=sflag, size = 0x4, scoped, tag = 'scoped memory for tpu_custom_call.1']
    %13 = vsyncpa [#allocation3], 0
    // Predicated region
    $region2: #{tpu_custom_call.1} parent=1 // pred_check
      _
    $region3: #{tpu_custom_call.1} parent=1 // pred_check_branch
      %15 = sbr.rel (0) target = $region5
    $region4: #{tpu_custom_call.1} parent=1 // pred_region
      _
    $region5: #{tpu_custom_call.1} parent=1 // pred_fallthru
      _
    // Predicated region
    $region6: #{tpu_custom_call.1} parent=1 // pred_check
      _
    $region7: #{tpu_custom_call.1} parent=1 // pred_check_branch
      %17 = sbr.rel (0) target = $region9
    $region8: #{tpu_custom_call.1} parent=1 // pred_region
      _
    $region9: #{tpu_custom_call.1} parent=1 // pred_fallthru
      _
    // Predicated region
    $region10: #{tpu_custom_call.1} parent=1 // pred_check
      _
    $region11: #{tpu_custom_call.1} parent=1 // pred_check_branch
      %19 = sbr.rel (0) target = $region13
    $region12: #{tpu_custom_call.1} parent=1 // pred_region
      _
    $region13: #{tpu_custom_call.1} parent=1 // pred_fallthru
      _
    // Predicated region
    $region14: #{tpu_custom_call.1} parent=1 // pred_check
      _
    $region15: #{tpu_custom_call.1} parent=1 // pred_check_branch
      %21 = sbr.rel (0) target = $region17
    $region16: #{tpu_custom_call.1} parent=1 // pred_region
      _
    $region17: #{tpu_custom_call.1} parent=1 // pred_fallthru
      _
    // Predicated region
    $region18: #{tpu_custom_call.1} parent=1 // pred_check
      _
    $region19: #{tpu_custom_call.1} parent=1 // pred_check_branch
      %23 = sbr.rel (0) target = $region21
    $region20: #{tpu_custom_call.1} parent=1 // pred_region
      _
    $region21: #{tpu_custom_call.1} parent=1 // pred_fallthru
      _
    // Predicated region
    $region22: #{tpu_custom_call.1} parent=1 // pred_check
      _
    $region23: #{tpu_custom_call.1} parent=1 // pred_check_branch
      %25 = sbr.rel (0) target = $region25
    $region24: #{tpu_custom_call.1} parent=1 // pred_region
      _
    $region25: #{tpu_custom_call.1} parent=1 // pred_fallthru
      _
    // Predicated region
    $region26: #{tpu_custom_call.1} parent=1 // pred_check
      _
    $region27: #{tpu_custom_call.1} parent=1 // pred_check_branch
      %27 = sbr.rel (0) target = $region29
    $region28: #{tpu_custom_call.1} parent=1 // pred_region
      _
    $region29: #{tpu_custom_call.1} parent=1 // pred_fallthru
      _
    // Predicated region
    $region30: #{tpu_custom_call.1} parent=1 // pred_check
      _
    $region31: #{tpu_custom_call.1} parent=1 // pred_check_branch
      %29 = sbr.rel (0) target = $region33
    $region32: #{tpu_custom_call.1} parent=1 // pred_region
      _
    $region33: #{tpu_custom_call.1} parent=1 // pred_fallthru
      _
    %v30 = vld [vmem:[%s0] sm:$0x3]
    %v31 = vld [vmem:[%s1] sm:$0x3]
    %v32 = vld [vmem:[%s2] sm:$0xff]
    %v33 = vld [vmem:[%s2 + $0x8] sm:$0xff]
    %v34 = vld [vmem:[%s2 + $0x10] sm:$0xff]
    %v35 = vld [vmem:[%s2 + $0x18] sm:$0xff]
    %v36 = vld [vmem:[%s2 + $0x20] sm:$0xff]
    %v37 = vld [vmem:[%s2 + $0x28] sm:$0xff]
    %v38 = vld [vmem:[%s2 + $0x30] sm:$0xff]
    %v39 = vld [vmem:[%s2 + $0x38] sm:$0xff]
    %v40 = vld [vmem:[%s2 + $0x40] sm:$0xff]
    %v41 = vld [vmem:[%s2 + $0x48] sm:$0xff]
    %v42 = vld [vmem:[%s2 + $0x50] sm:$0xff]
    %v43 = vld [vmem:[%s2 + $0x58] sm:$0xff]
    %v44 = vld [vmem:[%s3] sm:$0xff]
    %v45 = vld [vmem:[%s3 + $0x8] sm:$0xff]
    %v46 = vld [vmem:[%s3 + $0x10] sm:$0xff]
    %v47 = vld [vmem:[%s3 + $0x18] sm:$0xff]
    %v48 = vld [vmem:[%s3 + $0x20] sm:$0xff]
    %v49 = vld [vmem:[%s3 + $0x28] sm:$0xff]
    %vm50 = vcmask 392192
    %v52 = vsel %vm50, %v31, 0
    %54 = vmatpush.msra.mxu0 0.0
    %55 = vmatpush.msra.mxu0 0.0
    %56 = vmatpush.msra.mxu0 0.0
    %57 = vmatpush.msra.mxu0 0.0
    %58 = vmatpush.msra.mxu0 0.0
    %59 = vmatpush.msra.mxu0 0.0
    %60 = vmatpush.msra.mxu0 0.0
    %61 = vmatpush.msra.mxu0 0.0
    %62 = vmatpush.msra.mxu0 0.0
    %63 = vmatpush.msra.mxu0 0.0
    %64 = vmatpush.msra.mxu0 %v49
    %65 = vmatpush.msra.mxu0 %v48
    %66 = vmatpush.msra.mxu0 %v47
    %67 = vmatpush.msra.mxu0 %v46
    %68 = vmatpush.msra.mxu0 %v45
    %69 = vmatpush.msra.mxu0 %v44
    %70 = vmatmul.f32.gmra.mxu0 %v52
    %v71 = vpop.f32.mrf.mxu0
    %v72 = vadd.f32 0.0, %v71
    %73 = vdwg.mxu0
    %vm74 = vcmask 785408
    %v76 = vsel %vm74, %v30, 0
    %78 = vmatpush.msra.mxu0 0.0
    %79 = vmatpush.msra.mxu0 0.0
    %80 = vmatpush.msra.mxu0 0.0
    %81 = vmatpush.msra.mxu0 0.0
    %82 = vmatpush.msra.mxu0 %v43
    %83 = vmatpush.msra.mxu0 %v42
    %84 = vmatpush.msra.mxu0 %v41
    %85 = vmatpush.msra.mxu0 %v40
    %86 = vmatpush.msra.mxu0 %v39
    %87 = vmatpush.msra.mxu0 %v38
    %88 = vmatpush.msra.mxu0 %v37
    %89 = vmatpush.msra.mxu0 %v36
    %90 = vmatpush.msra.mxu0 %v35
    %91 = vmatpush.msra.mxu0 %v34
    %92 = vmatpush.msra.mxu0 %v33
    %93 = vmatpush.msra.mxu0 %v32
    %94 = vmatmul.f32.gmra.mxu0 %v76
    %v95 = vpop.f32.mrf.mxu0
    %v96 = vadd.f32 %v72, %v95
    %97 = vdwg.mxu0
    %v98 = vld [vmem:[%s4] sm:$0x1]
    %v100 = vperm.slane %v98, 0
    %v102 = vadd.f32 %v96, %v100
    %v103 = vadd.f32 %v102, %v31
    %v104 = vsub.f32 0.0, %v103
    %v105 = vmul.f32 %v104, 1.442695
    %v106 = vpow.pop %v105
    %v107 = vadd.f32 %v106, 1.0
    %v108 = vrcp.pop %v107
    %v109 = vmul.f32 %v107, %v108
    %v110 = vsub.f32 1.0, %v109
    %v111 = vmul.f32 %v108, %v110
    %v112 = vadd.f32 %v108, %v111
    %vm113 = vweird.f32 %v107
    %vm114 = vweird.f32 %v108
    %vm115 = vmor %vm113, %vm114
    %v116 = vsel %vm115, %v108, %v112
    %v117 = vand.u32 2147483647, %v107
    %vm118 = vcmp.eq.f32.partialorder %v117, 8.507059e+37
    %v119 = vand.u32 %v107, 2147483648
    %v120 = vor.u32 1.1754944e-38, %v119
    %v121 = vsel %vm118, %v120, %v116
    %v122 = vmul.f32 1.0, %v121
    %v123 = vmul.f32 %v103, %v122
    %v124 = vld [vmem:[%s5] sm:$0xff]
    %v125 = vld [vmem:[%s5 + $0x8] sm:$0xff]
    %v126 = vld [vmem:[%s5 + $0x10] sm:$0xff]
    %v127 = vld [vmem:[%s5 + $0x18] sm:$0xff]
    %v128 = vld [vmem:[%s5 + $0x20] sm:$0xff]
    %v129 = vld [vmem:[%s5 + $0x28] sm:$0xff]
    %v130 = vld [vmem:[%s5 + $0x30] sm:$0xff]
    %v131 = vld [vmem:[%s5 + $0x38] sm:$0xff]
    %v132 = vld [vmem:[%s5 + $0x40] sm:$0xff]
    %v133 = vld [vmem:[%s5 + $0x48] sm:$0xff]
    %v134 = vld [vmem:[%s5 + $0x50] sm:$0xff]
    %v135 = vld [vmem:[%s5 + $0x58] sm:$0xff]
    %v136 = vld [vmem:[%s6] sm:$0xff]
    %v137 = vld [vmem:[%s6 + $0x8] sm:$0xff]
    %v138 = vld [vmem:[%s6 + $0x10] sm:$0xff]
    %v139 = vld [vmem:[%s6 + $0x18] sm:$0xff]
    %v140 = vld [vmem:[%s6 + $0x20] sm:$0xff]
    %v141 = vld [vmem:[%s6 + $0x28] sm:$0xff]
    %v143 = vsel %vm50, %v123, 0
    %145 = vmatpush.msra.mxu0 0.0
    %146 = vmatpush.msra.mxu0 0.0
    %147 = vmatpush.msra.mxu0 0.0
    %148 = vmatpush.msra.mxu0 0.0
    %149 = vmatpush.msra.mxu0 0.0
    %150 = vmatpush.msra.mxu0 0.0
    %151 = vmatpush.msra.mxu0 0.0
    %152 = vmatpush.msra.mxu0 0.0
    %153 = vmatpush.msra.mxu0 0.0
    %154 = vmatpush.msra.mxu0 0.0
    %155 = vmatpush.msra.mxu0 %v141
    %156 = vmatpush.msra.mxu0 %v140
    %157 = vmatpush.msra.mxu0 %v139
    %158 = vmatpush.msra.mxu0 %v138
    %159 = vmatpush.msra.mxu0 %v137
    %160 = vmatpush.msra.mxu0 %v136
    %161 = vmatmul.f32.gmra.mxu0 %v143
    %v162 = vpop.f32.mrf.mxu0
    %v163 = vadd.f32 0.0, %v162
    %164 = vdwg.mxu0
    %165 = vmatpush.msra.mxu0 0.0
    %166 = vmatpush.msra.mxu0 0.0
    %167 = vmatpush.msra.mxu0 0.0
    %168 = vmatpush.msra.mxu0 0.0
    %169 = vmatpush.msra.mxu0 %v135
    %170 = vmatpush.msra.mxu0 %v134
    %171 = vmatpush.msra.mxu0 %v133
    %172 = vmatpush.msra.mxu0 %v132
    %173 = vmatpush.msra.mxu0 %v131
    %174 = vmatpush.msra.mxu0 %v130
    %175 = vmatpush.msra.mxu0 %v129
    %176 = vmatpush.msra.mxu0 %v128
    %177 = vmatpush.msra.mxu0 %v127
    %178 = vmatpush.msra.mxu0 %v126
    %179 = vmatpush.msra.mxu0 %v125
    %180 = vmatpush.msra.mxu0 %v124
    %181 = vmatmul.f32.gmra.mxu0 %v76
    %v182 = vpop.f32.mrf.mxu0
    %v183 = vadd.f32 %v163, %v182
    %184 = vdwg.mxu0
    %v185 = vld [vmem:[%s7] sm:$0x1]
    %v187 = vperm.slane %v185, 0
    %v189 = vadd.f32 %v183, %v187
    %v190 = vadd.f32 %v189, %v31
    %vm191 = vcmask 386048
    %192 = vst.msk [vmem:[#allocation2] sm:$0x3] %vm191, %v190
    // Predicated region
    $region34: #{tpu_custom_call.1} parent=1 // pred_check
      _
    $region35: #{tpu_custom_call.1} parent=1 // pred_check_branch
      %194 = sbr.rel (0) target = $region37
    $region36: #{tpu_custom_call.1} parent=1 // pred_region
      %196 = vsyncadd [#allocation3], 0
      %s198 = sshll.u32 [#allocation2], 4
      %s199 = int_to_ptr.vmem [resolvable:$true] %s198
      %s200 = sshll.u32 %s8, 4
      %s201 = int_to_ptr.hbm [resolvable:$true] %s200
      %203 = dma.vmem_to_hbm [thread:$0]  %s199, 32, %s201, [#allocation3]
    $region37: #{tpu_custom_call.1} parent=1 // pred_fallthru
      _
    // Predicated region
    $region38: #{tpu_custom_call.1} parent=1 // pred_check
      _
    $region39: #{tpu_custom_call.1} parent=1 // pred_check_branch
      %205 = sbr.rel (0) target = $region41
    $region40: #{tpu_custom_call.1} parent=1 // pred_region
      %207 = dma.done [#allocation3], 32
    $region41: #{tpu_custom_call.1} parent=1 // pred_fallthru
      _
    %208 = vsyncpa [#allocation3], 1

</llo_original>
